<compile_context>
chip_gen: v6e
topology: v6e:2x2x1
jax: 0.10.0
libtpu: 0.0.40
codegen_flags: <defaults>
</compile_context>

<pallas_src>
import jax
import jax.numpy as jnp
from jax.experimental import pallas as pl
from jax.experimental.pallas import tpu as pltpu


def _prompt_extract_kernel(feats_ref, proj_ref, out_ref):
    T, tn, Dm = feats_ref.shape
    De = proj_ref.shape[1]

    # encode_text tail for every (template, noun) row of this N-tile as a single
    # MXU matmul: (T*tn, Dm) @ (Dm, De) -> f32 (projection stays resident).
    x = feats_ref[...].reshape(T * tn, Dm)
    w = proj_ref[...]
    tf = jnp.dot(x, w, preferred_element_type=jnp.float32).reshape(T, tn, De)

    # text_features /= text_features.norm(dim=-1, keepdim=True)
    # rsqrt lowers to the EUP slot; keeps VALU free.
    s = jnp.sum(tf * tf, axis=-1, keepdims=True)
    tf = tf * jax.lax.rsqrt(s + 1e-12)

    # stack(...).mean(dim=0): elementwise add of T resident slabs, then scale.
    mean = jnp.sum(tf, axis=0) * (1.0 / T)                       # (tn, De)

    # final per-row L2 normalization
    s2 = jnp.sum(mean * mean, axis=-1, keepdims=True)
    out_ref[...] = (mean * jax.lax.rsqrt(s2 + 1e-12)).astype(out_ref.dtype)


def predefined_prompt_extract(feats, proj, *, tile_n=None):
    """feats: [T, N, D_model] f32, proj: [D_model, D_embed] f32 -> [N, D_embed] f32."""
    T, N, Dm = feats.shape
    De = proj.shape[1]
    if tile_n is None:
        tile_n = N if N <= 256 else 256
    assert N % tile_n == 0, "N must be divisible by tile_n"

    cost = pl.CostEstimate(
        flops=2 * T * N * Dm * De,
        transcendentals=T * N + N,                       # per-row rsqrts
        bytes_accessed=4 * (T * N * Dm + Dm * De + N * De),
    )

    return pl.pallas_call(
        _prompt_extract_kernel,
        out_shape=jax.ShapeDtypeStruct((N, De), jnp.float32),
        grid_spec=pltpu.PrefetchScalarGridSpec(
            num_scalar_prefetch=0,
            grid=(N // tile_n,),                          # independent noun tiles only
            in_specs=[
                # one N-tile of features for ALL templates at once
                pl.BlockSpec((T, tile_n, Dm), lambda i: (0, i, 0)),
                # text_projection, constant across the grid (never re-fetched)
                pl.BlockSpec((Dm, De), lambda i: (0, 0)),
            ],
            out_specs=pl.BlockSpec((tile_n, De), lambda i: (i, 0)),
        ),
        compiler_params=pltpu.CompilerParams(
            dimension_semantics=("parallel",),            # shard N tiles across TCs (v7x)
        ),
        cost_estimate=cost,
    )(feats, proj)


def _reference(feats, proj):
    tf = jnp.einsum("tnd,de->tne", feats, proj)
    tf = tf / jnp.linalg.norm(tf, axis=-1, keepdims=True)
    mean = tf.mean(axis=0)
    return mean / jnp.linalg.norm(mean, axis=-1, keepdims=True)


if __name__ == "__main__":
    # Small, module-consistent synthetic shapes:
    #   3 templates ("a photo of a {}.", ...), 8 nouns, model width 64,
    #   embed dim 128 (multiple of 128 -> lane-dense, unmasked stores).
    T, N, D_MODEL, D_EMBED = 3, 8, 64, 128

    key = jax.random.PRNGKey(0)
    k_feats, k_proj = jax.random.split(key)

    # Deterministic stand-ins for the CLIP text-transformer pooled output and
    # clip_model.text_projection (see TODO above).
    feats = jax.random.normal(k_feats, (T, N, D_MODEL), dtype=jnp.float32)
    proj = jax.random.normal(k_proj, (D_MODEL, D_EMBED), dtype=jnp.float32) / jnp.sqrt(D_MODEL)

    out = jax.block_until_ready(predefined_prompt_extract(feats, proj))

    ref = _reference(feats, proj)
    assert out.shape == (N, D_EMBED)
    assert jnp.allclose(out, ref, atol=1e-5, rtol=1e-5), "mismatch vs reference"

    print("KERNEL_OK")
</pallas_src>

<mosaic_0001>
module attributes {stable_mosaic.version = 11 : i64} {
  func.func @_prompt_extract_kernel(%arg0: i32, %arg1: memref<3x8x64xf32, #tpu.memory_space<vmem>>, %arg2: memref<64x128xf32, #tpu.memory_space<vmem>>, %arg3: memref<8x128xf32, #tpu.memory_space<vmem>>) attributes {dimension_semantics = [#tpu.dimension_semantics<parallel>], iteration_bounds = array<i64: 1>, scalar_prefetch = 0 : i64, scratch_operands = 0 : i64, tpu.core_type = #tpu.core_type<tc>, window_params = [{transform_indices = @transform_0, window_bounds = array<i64: 3, 8, 64>}, {pipeline_mode = #tpu.pipeline_mode<synchronous>, transform_indices = @transform_1, window_bounds = array<i64: 64, 128>}, {transform_indices = @transform_2, window_bounds = array<i64: 8, 128>}]} {
    %c0 = arith.constant 0 : index
    %c0_0 = arith.constant 0 : index
    %c0_1 = arith.constant 0 : index
    %0 = vector.load %arg1[%c0, %c0_0, %c0_1] : memref<3x8x64xf32, #tpu.memory_space<vmem>>, vector<3x8x64xf32>
    %1 = vector.shape_cast %0 : vector<3x8x64xf32> to vector<24x64xf32>
    %c0_2 = arith.constant 0 : index
    %c0_3 = arith.constant 0 : index
    %2 = vector.load %arg2[%c0_2, %c0_3] : memref<64x128xf32, #tpu.memory_space<vmem>>, vector<64x128xf32>
    %cst = arith.constant dense<0.000000e+00> : vector<24x128xf32>
    %3 = tpu.matmul %1, %2, %cst {dimension_numbers = #tpu.dot_dimension_numbers<[1], [0], [0], [1], [0, 0, 1, 1], [], []>} : vector<24x64xf32>, vector<64x128xf32>, vector<24x128xf32> -> vector<24x128xf32>
    %4 = vector.shape_cast %3 : vector<24x128xf32> to vector<3x8x128xf32>
    %5 = arith.mulf %4, %4 : vector<3x8x128xf32>
    %cst_4 = arith.constant dense<0.000000e+00> : vector<3x8xf32>
    %6 = vector.multi_reduction <add>, %5, %cst_4 [2] : vector<3x8x128xf32> to vector<3x8xf32>
    %7 = vector.shape_cast %6 : vector<3x8xf32> to vector<3x8x1xf32>
    %cst_5 = arith.constant 9.99999996E-13 : f32
    %8 = vector.broadcast %cst_5 : f32 to vector<3x8x1xf32>
    %9 = arith.addf %7, %8 : vector<3x8x1xf32>
    %10 = math.rsqrt %9 : vector<3x8x1xf32>
    %11 = vector.broadcast %10 : vector<3x8x1xf32> to vector<3x8x128xf32>
    %12 = arith.mulf %4, %11 : vector<3x8x128xf32>
    %cst_6 = arith.constant dense<0.000000e+00> : vector<8x128xf32>
    %13 = vector.multi_reduction <add>, %12, %cst_6 [0] : vector<3x8x128xf32> to vector<8x128xf32>
    %cst_7 = arith.constant 0.333333343 : f32
    %14 = vector.broadcast %cst_7 : f32 to vector<8x128xf32>
    %15 = arith.mulf %13, %14 : vector<8x128xf32>
    %16 = arith.mulf %15, %15 : vector<8x128xf32>
    %cst_8 = arith.constant dense<0.000000e+00> : vector<8xf32>
    %17 = vector.multi_reduction <add>, %16, %cst_8 [1] : vector<8x128xf32> to vector<8xf32>
    %18 = vector.shape_cast %17 : vector<8xf32> to vector<8x1xf32>
    %cst_9 = arith.constant 9.99999996E-13 : f32
    %19 = vector.broadcast %cst_9 : f32 to vector<8x1xf32>
    %20 = arith.addf %18, %19 : vector<8x1xf32>
    %21 = math.rsqrt %20 : vector<8x1xf32>
    %22 = vector.broadcast %21 : vector<8x1xf32> to vector<8x128xf32>
    %23 = arith.mulf %15, %22 : vector<8x128xf32>
    %c0_10 = arith.constant 0 : index
    %c0_11 = arith.constant 0 : index
    %24 = vector.load %arg3[%c0_10, %c0_11] : memref<8x128xf32, #tpu.memory_space<vmem>>, vector<8x128xf32>
    tpu.vector_store %arg3[%c0_10, %c0_11], %23 {strides = array<i32>} : memref<8x128xf32, #tpu.memory_space<vmem>>, vector<8x128xf32>,
    return
  }
  func.func @transform_0(%arg0: i32) -> (i32, i32, i32) {
    %c0_i32 = arith.constant 0 : i32
    %c0_i32_0 = arith.constant 0 : i32
    %c0_i32_1 = arith.constant 0 : i32
    return %c0_i32, %arg0, %c0_i32_0 : i32, i32, i32
  }
  func.func @transform_1(%arg0: i32) -> (i32, i32) {
    %c0_i32 = arith.constant 0 : i32
    %c0_i32_0 = arith.constant 0 : i32
    %c0_i32_1 = arith.constant 0 : i32
    return %c0_i32, %c0_i32_0 : i32, i32
  }
  func.func @transform_2(%arg0: i32) -> (i32, i32) {
    %c0_i32 = arith.constant 0 : i32
    %c0_i32_0 = arith.constant 0 : i32
    return %arg0, %c0_i32 : i32, i32
  }
}

</mosaic_0001>

<llo_original>
// kernel: tpu_custom_call.1
$region0: #{tpu_custom_call.1}
  #allocation0 [shape = 'u32[]', space=smem, size = 0x4, offset = 0x4, fixed_abs, tag = 'smem constant byte address 0x4 - core index']
  #allocation1 [shape = 'u32[144,128]{1,0:T(1,128)}', space=vmem, size = 0x12000, scoped, tag = 'internal scratch']
  %s0 = inlined_call_operand.hbm [shape: f32[3,8,64], index: 0, kind: input, shape index: {}]
  %s1 = inlined_call_operand.hbm [shape: f32[64,128], index: 1, kind: input, shape index: {}]
  %s2 = inlined_call_operand.hbm [shape: f32[8,128], index: 2, kind: output, shape index: {}]
  %s3 = sld [smem:[#allocation0]]
  $region26: #{tpu_custom_call.1} parent=0
    _
  %s5 = ssub.s32 1, %s3
  %s6 = scalar_select 0, %s5, %s3
  $region1: #{tpu_custom_call.1} parent=0
    #allocation2 [shape = 'u8[12288]{0}', space=vmem, size = 0x3000, scoped, tag = 'input window, operand 0, single buffered']
    #allocation3 [shape = 's32[1]{0}', space=sflag, size = 0x4, scoped, tag = 'scoped memory for tpu_custom_call.1']
    #allocation4 [shape = 's32[1]{0}', space=sflag, size = 0x4, scoped, tag = 'scoped memory for tpu_custom_call.1']
    #allocation5 [shape = 'u8[32768]{0}', space=vmem, size = 0x8000, scoped, tag = 'input window, operand 1, single buffered']
    #allocation6 [shape = 's32[1]{0}', space=sflag, size = 0x4, scoped, tag = 'scoped memory for tpu_custom_call.1']
    #allocation7 [shape = 'u8[4096]{0}', space=vmem, size = 0x1000, scoped, tag = 'output window, operand 0, single buffered']
    %7 = vsyncpa [#allocation3], 0
    %8 = vsyncpa [#allocation6], 0
    %9 = vsyncpa [#allocation4], 0
    // Predicated region
    $region2: #{tpu_custom_call.1} parent=1 // pred_check
      _
    $region3: #{tpu_custom_call.1} parent=1 // pred_check_branch
      %11 = sbr.rel (0) target = $region5
    $region4: #{tpu_custom_call.1} parent=1 // pred_region
      %s13 = ssub.s32 384, 384
      %14 = vsyncadd [#allocation3], %s13
      %s15 = sshll.u32 [#allocation2], 4
      %s16 = int_to_ptr.vmem [resolvable:$true] %s15
      %21 = dma.hbm_to_vmem [thread:$0]  %s0, 384, %s16, [#allocation3], 128, 128, 8
    $region5: #{tpu_custom_call.1} parent=1 // pred_fallthru
      _
    // Predicated region
    $region6: #{tpu_custom_call.1} parent=1 // pred_check
      _
    $region7: #{tpu_custom_call.1} parent=1 // pred_check_branch
      %23 = sbr.rel (0) target = $region9
    $region8: #{tpu_custom_call.1} parent=1 // pred_region
      %s25 = ssub.s32 1024, 1024
      %26 = vsyncadd [#allocation6], %s25
      %s27 = sshll.u32 [#allocation5], 4
      %s28 = int_to_ptr.vmem [resolvable:$true] %s27
      %33 = dma.hbm_to_vmem [thread:$0]  %s1, 1024, %s28, [#allocation6], 128, 128, 8
    $region9: #{tpu_custom_call.1} parent=1 // pred_fallthru
      _
    // Predicated region
    $region10: #{tpu_custom_call.1} parent=1 // pred_check
      _
    $region11: #{tpu_custom_call.1} parent=1 // pred_check_branch
      %35 = sbr.rel (0) target = $region13
    $region12: #{tpu_custom_call.1} parent=1 // pred_region
      %36 = dma.done [#allocation3], 384
    $region13: #{tpu_custom_call.1} parent=1 // pred_fallthru
      _
    // Predicated region
    $region14: #{tpu_custom_call.1} parent=1 // pred_check
      _
    $region15: #{tpu_custom_call.1} parent=1 // pred_check_branch
      %38 = sbr.rel (0) target = $region17
    $region16: #{tpu_custom_call.1} parent=1 // pred_region
      %39 = dma.done [#allocation6], 1024
    $region17: #{tpu_custom_call.1} parent=1 // pred_fallthru
      _
    %v40 = vld [vmem:[#allocation2] sm:$0xff]
    %v41 = vld [vmem:[#allocation2 + $0x8] sm:$0xff]
    %v42 = vld [vmem:[#allocation2 + $0x10] sm:$0xff]
    %v43 = vld [vmem:[#allocation5] sm:$0xff]
    %v44 = vld [vmem:[#allocation5 + $0x8] sm:$0xff]
    %v45 = vld [vmem:[#allocation5 + $0x10] sm:$0xff]
    %v46 = vld [vmem:[#allocation5 + $0x18] sm:$0xff]
    %v47 = vld [vmem:[#allocation5 + $0x20] sm:$0xff]
    %v48 = vld [vmem:[#allocation5 + $0x28] sm:$0xff]
    %v49 = vld [vmem:[#allocation5 + $0x30] sm:$0xff]
    %v50 = vld [vmem:[#allocation5 + $0x38] sm:$0xff]
    %vm51 = vcmask 523264
    %v53 = vsel %vm51, %v40, 0
    %v56 = vsel %vm51, %v41, 0
    %v59 = vsel %vm51, %v42, 0
    %61 = vmatprep.subr.mxu0 0.0
    %62 = vmatpush1.msra.mxu0 0.0
    %63 = vmatprep.subr.mxu0 0.0
    %64 = vmatpush1.msra.mxu0 0.0
    %65 = vmatprep.subr.mxu0 0.0
    %66 = vmatpush1.msra.mxu0 0.0
    %67 = vmatprep.subr.mxu0 0.0
    %68 = vmatpush1.msra.mxu0 0.0
    %69 = vmatprep.subr.mxu0 0.0
    %70 = vmatpush1.msra.mxu0 0.0
    %71 = vmatprep.subr.mxu0 0.0
    %72 = vmatpush1.msra.mxu0 0.0
    %73 = vmatprep.subr.mxu0 0.0
    %74 = vmatpush1.msra.mxu0 0.0
    %75 = vmatprep.subr.mxu0 0.0
    %76 = vmatpush1.msra.mxu0 0.0
    %77 = vmatprep.subr.mxu0 0.0
    %78 = vmatpush1.msra.mxu0 %v50
    %79 = vmatprep.subr.mxu0 0.0
    %80 = vmatpush1.msra.mxu0 %v49
    %81 = vmatprep.subr.mxu0 0.0
    %82 = vmatpush1.msra.mxu0 %v48
    %83 = vmatprep.subr.mxu0 0.0
    %84 = vmatpush1.msra.mxu0 %v47
    %85 = vmatprep.subr.mxu0 0.0
    %86 = vmatpush1.msra.mxu0 %v46
    %87 = vmatprep.subr.mxu0 0.0
    %88 = vmatpush1.msra.mxu0 %v45
    %89 = vmatprep.subr.mxu0 0.0
    %90 = vmatpush1.msra.mxu0 %v44
    %91 = vmatprep.subr.mxu0 0.0
    %92 = vmatpush1.msra.mxu0 %v43
    %93 = vmatprep.subr.mxu0 0.0
    %94 = vmatpush2.msra.mxu0 0.0
    %95 = vmatprep.subr.mxu0 0.0
    %96 = vmatpush2.msra.mxu0 0.0
    %97 = vmatprep.subr.mxu0 0.0
    %98 = vmatpush2.msra.mxu0 0.0
    %99 = vmatprep.subr.mxu0 0.0
    %100 = vmatpush2.msra.mxu0 0.0
    %101 = vmatprep.subr.mxu0 0.0
    %102 = vmatpush2.msra.mxu0 0.0
    %103 = vmatprep.subr.mxu0 0.0
    %104 = vmatpush2.msra.mxu0 0.0
    %105 = vmatprep.subr.mxu0 0.0
    %106 = vmatpush2.msra.mxu0 0.0
    %107 = vmatprep.subr.mxu0 0.0
    %108 = vmatpush2.msra.mxu0 0.0
    %109 = vmatprep.subr.mxu0 0.0
    %110 = vmatpush2.msra.mxu0 0.0
    %111 = vmatprep.subr.mxu0 0.0
    %112 = vmatpush2.msra.mxu0 0.0
    %113 = vmatprep.subr.mxu0 0.0
    %114 = vmatpush2.msra.mxu0 0.0
    %115 = vmatprep.subr.mxu0 0.0
    %116 = vmatpush2.msra.mxu0 0.0
    %117 = vmatprep.subr.mxu0 0.0
    %118 = vmatpush2.msra.mxu0 0.0
    %119 = vmatprep.subr.mxu0 0.0
    %120 = vmatpush2.msra.mxu0 0.0
    %121 = vmatprep.subr.mxu0 0.0
    %122 = vmatpush2.msra.mxu0 0.0
    %123 = vmatprep.subr.mxu0 0.0
    %124 = vmatpush2.msra.mxu0 0.0
    %125 = vmatprep.mubr.f32.mxu0 0.0
    %126 = vmatmul.mubr.f32.gmra.mxu0 %v53
    %v127 = vpop.f32.mrf.mxu0
    %v128 = vadd.f32 0.0, %v127
    %v129 = vpop.f32.mrf.mxu0
    %130 = vmatprep.mubr.f32.mxu0 0.0
    %131 = vmatmul.mubr.f32.gmra.mxu0 %v56
    %v132 = vpop.f32.mrf.mxu0
    %v133 = vadd.f32 0.0, %v132
    %v134 = vpop.f32.mrf.mxu0
    %135 = vmatprep.mubr.f32.mxu0 0.0
    %136 = vmatmul.mubr.f32.gmra.mxu0 %v59
    %v137 = vpop.f32.mrf.mxu0
    %v138 = vadd.f32 0.0, %v137
    %v139 = vpop.f32.mrf.mxu0
    %140 = vdwg.mxu0
    %v141 = vmul.f32 %v128, %v128
    %v142 = vmul.f32 %v133, %v133
    %v143 = vmul.f32 %v138, %v138
    %144 = vadd.xlane.f32.xlu0 %v141
    %v145 = vpop.xlane.xlu0 %144
    %146 = vadd.xlane.f32.xlu0 %v142
    %v147 = vpop.xlane.xlu0 %146
    %148 = vadd.xlane.f32.xlu0 %v143
    %v149 = vpop.xlane.xlu0 %148
    %v150 = vadd.f32 %v145, 1e-12
    %v151 = vadd.f32 %v147, 1e-12
    %v152 = vadd.f32 %v149, 1e-12
    %v153 = vrsqrt.pop %v150
    %v154 = vrsqrt.pop %v151
    %v155 = vrsqrt.pop %v152
    %v156 = vmul.f32 %v128, %v153
    %v157 = vmul.f32 %v133, %v154
    %v158 = vmul.f32 %v138, %v155
    %v159 = vadd.f32 %v156, %v157
    %v160 = vadd.f32 %v159, %v158
    %v161 = vmul.f32 %v160, 0.33333334
    %v162 = vmul.f32 %v161, %v161
    %163 = vadd.xlane.f32.xlu0 %v162
    %v164 = vpop.xlane.xlu0 %163
    %v165 = vadd.f32 %v164, 1e-12
    %v166 = vrsqrt.pop %v165
    %v167 = vmul.f32 %v161, %v166
    %168 = vst [vmem:[#allocation7] sm:$0xff] %v167
    // Predicated region
    $region18: #{tpu_custom_call.1} parent=1 // pred_check
      _
    $region19: #{tpu_custom_call.1} parent=1 // pred_check_branch
      %170 = sbr.rel (0) target = $region21
    $region20: #{tpu_custom_call.1} parent=1 // pred_region
      %s172 = ssub.s32 128, 128
      %173 = vsyncadd [#allocation4], %s172
      %s175 = sshll.u32 [#allocation7], 4
      %s176 = int_to_ptr.vmem [resolvable:$true] %s175
      %178 = dma.vmem_to_hbm [thread:$0]  %s176, 128, %s2, [#allocation4]
    $region21: #{tpu_custom_call.1} parent=1 // pred_fallthru
      _
    // Predicated region
    $region22: #{tpu_custom_call.1} parent=1 // pred_check
      _
    $region23: #{tpu_custom_call.1} parent=1 // pred_check_branch
      %180 = sbr.rel (0) target = $region25
    $region24: #{tpu_custom_call.1} parent=1 // pred_region
      %181 = dma.done [#allocation4], 128
    $region25: #{tpu_custom_call.1} parent=1 // pred_fallthru
      _
    %182 = vsyncpa [#allocation3], 1
    %183 = vsyncpa [#allocation6], 1
    %184 = vsyncpa [#allocation4], 1

</llo_original>
